<compile_context>
chip_gen: v6e
topology: v6e:2x2x1
jax: 0.10.0
libtpu: 0.0.40
codegen_flags: <defaults>
</compile_context>

<pallas_src>
import jax
import jax.numpy as jnp
import numpy as np
from jax.experimental import pallas as pl
from jax.experimental.pallas import tpu as pltpu


# ----------------------------------------------------------------------------
# One-time, per-backend calibration of pltpu.roll's lane-rotate direction so the
# tap-shift construction is robust across jax / Mosaic versions.
#   True  -> pltpu.roll matches jnp.roll:  out[i] = x[(i - shift) % n]
#   False -> opposite direction:           out[i] = x[(i + shift) % n]
# ----------------------------------------------------------------------------
_ROLL_IS_JNP = {}


def _roll_matches_jnp():
    backend = jax.default_backend()
    if backend not in _ROLL_IS_JNP:
        n = 256

        def probe(x_ref, o_ref):
            o_ref[...] = pltpu.roll(x_ref[...], 5, axis=1)

        x = jnp.broadcast_to(jnp.arange(n, dtype=jnp.float32), (8, n))
        out = pl.pallas_call(
            probe, out_shape=jax.ShapeDtypeStruct((8, n), jnp.float32))(x)
        # jnp.roll(arange, 5)[5] == 0 ; the opposite convention gives 10.
        _ROLL_IS_JNP[backend] = bool(np.asarray(out)[0, 5] == 0.0)
    return _ROLL_IS_JNP[backend]


# ----------------------------------------------------------------------------
# Kernel: one batch sample per grid step; writes the full concat slab directly.
# ----------------------------------------------------------------------------
def make_consolidator_kernel(dim, fmap_dims, F_, H, W, groups, eps, roll_is_jnp):
    """refs = (x_ref, [fm_i, w_i, b_i, gamma_i, beta_i] * n_fmaps, o_ref)

      x_ref : (1, dim, N)        input dtype, N = F*H*W on lanes
      fm_i  : (1, Cin_i, N)      bf16 resized feature map (lane-dense)
      w_i   : (9, Cout_i, Cin_i) bf16 conv taps, tap index = ky*3 + kx
      b/gamma/beta_i : (Cout_i, 1) f32
      o_ref : (1, dim + sum(Cout_i), N)   concat slab
    """
    N = F_ * H * W

    def kernel(*refs):
        x_ref = refs[0]
        o_ref = refs[-1]

        # ---- passthrough of x's channels into the concat slab ----
        o_ref[0, 0:dim, :] = x_ref[0].astype(o_ref.dtype)

        # ---- 3x3 "same"-padding border masks, hoisted & shared by all fmaps ----
        n_idx = jax.lax.broadcasted_iota(jnp.int32, (1, N), 1)
        w_idx = n_idx % W
        h_idx = (n_idx // W) % H
        taps = []                                    # [(shift, mask_or_None)] x 9
        for ky in range(3):
            dy = ky - 1
            for kx in range(3):
                dx = kx - 1
                d = dy * W + dx
                if d == 0:
                    taps.append((0, None))
                else:
                    ok = jnp.logical_and(
                        jnp.logical_and(h_idx + dy >= 0, h_idx + dy < H),
                        jnp.logical_and(w_idx + dx >= 0, w_idx + dx < W))
                    shift = (-d) % N if roll_is_jnp else d % N
                    taps.append((shift, ok))

        # ---- per-fmap Conv3d(1,3,3) + GroupNorm + SiLU at its channel offset ----
        off = dim
        for i, (cin, cout) in enumerate(fmap_dims):
            fm_ref, w_ref, b_ref, g_ref, bt_ref = refs[1 + 5 * i: 6 + 5 * i]
            cg = cout // groups
            inv_cnt = 1.0 / float(cg * N)

            xb = fm_ref[0]                                   # (cin, N) bf16

            # conv: 9 accumulated (cout, cin) @ (cin, N) bf16 MXU matmuls; f32 acc
            # lives in vregs, taps never touch VMEM.
            acc = None
            for t, (shift, ok) in enumerate(taps):
                if ok is None:
                    tap = xb
                else:
                    s = pltpu.roll(xb, shift, axis=1)
                    tap = jnp.where(ok, s, jnp.zeros_like(s))
                p = jnp.dot(w_ref[t], tap, preferred_element_type=jnp.float32)
                acc = p if acc is None else acc + p          # (cout, N) f32

            bias = b_ref[...]                                # (cout, 1) f32
            gamma = g_ref[...]
            beta = bt_ref[...]

            # GroupNorm: two-pass centered variance with the conv bias folded into
            # the stats.  Group mixing of the tiny (cout, 1) columns is done with
            # per-group VPU reductions (no MXU on the serial stats path).
            s1 = jnp.sum(acc, axis=1, keepdims=True) + float(N) * bias   # (cout, 1)
            if cg == 1:
                mean = s1 * inv_cnt
            else:
                row_grp = jax.lax.broadcasted_iota(jnp.int32, (cout, 1), 0) // cg
                mean = jnp.zeros((cout, 1), jnp.float32)
                for g in range(groups):
                    gm = jnp.sum(s1[g * cg:(g + 1) * cg, :], axis=0,
                                 keepdims=True) * inv_cnt            # (1, 1)
                    mean = mean + jnp.where(row_grp == g, gm, 0.0)

            bias_m = bias - mean                              # per-channel centering
            ssq = jnp.sum((acc + bias_m) ** 2, axis=1, keepdims=True)    # (cout, 1)
            if cg == 1:
                inv_std = jax.lax.rsqrt(ssq * inv_cnt + eps)
            else:
                inv_std = jnp.zeros((cout, 1), jnp.float32)
                for g in range(groups):
                    gv = jnp.sum(ssq[g * cg:(g + 1) * cg, :], axis=0,
                                 keepdims=True) * inv_cnt
                    inv_std = inv_std + jnp.where(row_grp == g,
                                                  jax.lax.rsqrt(gv + eps), 0.0)

            # hoisted per-channel affine: y = z*scale + shift
            scale = inv_std * gamma                           # (cout, 1)
            shift_c = bias_m * scale + beta

            y = acc * scale + shift_c                         # (cout, N) f32
            sig = pl.reciprocal(1.0 + jnp.exp(-y), approx=True)   # EUP exp + vrcp
            o_ref[0, off:off + cout, :] = (y * sig).astype(o_ref.dtype)
            off += cout

    return kernel


# ----------------------------------------------------------------------------
# Wrapper glue
# ----------------------------------------------------------------------------
def resize_nearest_hw(x, H_out, W_out):
    """Nearest-neighbor resize of the trailing (H, W) dims, matching
    torch.nn.functional.interpolate(mode='nearest')."""
    h_in, w_in = x.shape[-2], x.shape[-1]
    if h_in == H_out and w_in == W_out:
        return x                                       # identity: no HBM pass
    if H_out % h_in == 0 and W_out % w_in == 0:        # integer upscale: repeat
        x = jnp.repeat(x, H_out // h_in, axis=-2)
        x = jnp.repeat(x, W_out // w_in, axis=-1)
        return x
    hi = (jnp.arange(H_out) * h_in) // H_out           # general nearest gather
    wi = (jnp.arange(W_out) * w_in) // W_out
    return x[..., hi[:, None], wi[None, :]]


def feature_map_consolidator(x, fmaps=None, params=None, *, groups=8, eps=1e-5):
    """x: (B, dim, F, H, W); fmaps: list of (B, dim_in_i, F, h_i, w_i).

    Returns the consolidated (B, dim + sum(dim_out_i), F, H, W) tensor, computed by
    a single Pallas kernel that writes the channel-concat slab directly.
    """
    params = params or []
    fmaps = fmaps or []
    if not params:                                     # needs_consolidating == False
        return x
    B, dim, F_, H, W = x.shape
    N = F_ * H * W

    ins = [x.reshape(B, dim, N)]                       # metadata-only reshape
    in_specs = [pl.BlockSpec((1, dim, N), lambda bi: (bi, 0, 0))]
    fmap_dims = []
    for fmap, p in zip(fmaps, params):
        assert fmap.shape[0] == B and fmap.shape[2] == F_
        cin, cout = fmap.shape[1], p["w"].shape[0]
        assert cout % groups == 0, "GroupNorm requires groups to divide channels"
        fmap_dims.append((cin, cout))
        # resize_fmap_before + bf16 cast fused into one wrapper pass (halves the
        # kernel's fmap DMA).  TODO(synk): do the nearest expand inside the kernel.
        fm = resize_nearest_hw(fmap, H, W).astype(jnp.bfloat16).reshape(B, cin, N)
        # conv taps as (9, Cout, Cin) bf16, tap index = ky*3 + kx (matches kernel).
        w9 = jnp.transpose(p["w"][:, :, 0], (2, 3, 0, 1)).reshape(9, cout, cin)
        ins += [
            fm,
            w9.astype(jnp.bfloat16),
            p["b"].reshape(cout, 1).astype(jnp.float32),
            p["gamma"].reshape(cout, 1).astype(jnp.float32),
            p["beta"].reshape(cout, 1).astype(jnp.float32),
        ]
        in_specs += [
            pl.BlockSpec((1, cin, N), lambda bi: (bi, 0, 0)),
            pl.BlockSpec((9, cout, cin), lambda bi: (0, 0, 0)),
            pl.BlockSpec((cout, 1), lambda bi: (0, 0)),
            pl.BlockSpec((cout, 1), lambda bi: (0, 0)),
            pl.BlockSpec((cout, 1), lambda bi: (0, 0)),
        ]

    ctot = dim + sum(c for _, c in fmap_dims)
    kernel = make_consolidator_kernel(dim, tuple(fmap_dims), F_, H, W, groups,
                                      eps, _roll_matches_jnp())

    # Per-step VMEM footprint (double-buffered blocks, no scratch) is well under
    # the default scoped limit on v5e/v6e/v7x at these shapes.
    y = pl.pallas_call(
        kernel,
        out_shape=jax.ShapeDtypeStruct((B, ctot, N), x.dtype),
        grid=(B,),
        in_specs=in_specs,
        out_specs=pl.BlockSpec((1, ctot, N), lambda bi: (bi, 0, 0)),
        compiler_params=pltpu.CompilerParams(
            dimension_semantics=("parallel",)),        # B feeds both v7x TCs
    )(*ins)

    return y.reshape(B, ctot, F_, H, W)                # metadata-only reshape


# ----------------------------------------------------------------------------
# Pure-JAX reference (numeric sanity check; f32 HIGHEST precision)
# ----------------------------------------------------------------------------
def _ref_block(x_ncdhw, w, b, gamma, beta, groups, eps):
    y = jax.lax.conv_general_dilated(
        x_ncdhw, w, window_strides=(1, 1, 1),
        padding=((0, 0), (1, 1), (1, 1)),
        dimension_numbers=("NCDHW", "OIDHW", "NCDHW"),
        precision=jax.lax.Precision.HIGHEST)
    y = y + b.reshape(1, -1, 1, 1, 1)
    B, C = y.shape[0], y.shape[1]
    yg = y.reshape(B, groups, C // groups, *y.shape[2:])
    mean = yg.mean(axis=(2, 3, 4, 5), keepdims=True)
    var = jnp.mean((yg - mean) ** 2, axis=(2, 3, 4, 5), keepdims=True)
    yn = ((yg - mean) * jax.lax.rsqrt(var + eps)).reshape(y.shape)
    yn = yn * gamma.reshape(1, -1, 1, 1, 1) + beta.reshape(1, -1, 1, 1, 1)
    return yn * jax.nn.sigmoid(yn)


def feature_map_consolidator_ref(x, fmaps, params, *, groups=8, eps=1e-5):
    if not params:
        return x
    H, W = x.shape[-2:]
    outs = [x]
    for fmap, p in zip(fmaps, params):
        fm = resize_nearest_hw(fmap, H, W)
        y = _ref_block(fm, p["w"], p["b"], p["gamma"], p["beta"], groups, eps)
        outs.append(resize_nearest_hw(y, H, W))        # identity at these shapes
    return jnp.concatenate(outs, axis=1)


# ----------------------------------------------------------------------------
if __name__ == "__main__":
    key = jax.random.PRNGKey(0)
    B, dim, F_, H, W = 2, 4, 3, 16, 16
    dim_ins = (4, 8)
    dim_outs = (8, 16)
    groups = 8
    eps = 1e-5

    k = jax.random.split(key, 8)
    x = jax.random.normal(k[0], (B, dim, F_, H, W), jnp.float32)
    fmaps = [
        jax.random.normal(k[1], (B, dim_ins[0], F_, 8, 8), jnp.float32),
        jax.random.normal(k[2], (B, dim_ins[1], F_, 8, 8), jnp.float32),
    ]

    # Conv3d weights in PyTorch layout (Cout, Cin, 1, 3, 3);
    # GroupNorm affine initialized like PyTorch (gamma=1, beta=0).
    params = []
    ki = 3
    for cin, cout in zip(dim_ins, dim_outs):
        w = jax.random.normal(k[ki], (cout, cin, 1, 3, 3), jnp.float32) / np.sqrt(9.0 * cin)
        bias = jax.random.normal(k[ki + 1], (cout,), jnp.float32) * 0.1
        params.append(dict(
            w=w, b=bias,
            gamma=jnp.ones((cout,), jnp.float32),
            beta=jnp.zeros((cout,), jnp.float32),
        ))
        ki += 2

    out = feature_map_consolidator(x, fmaps, params, groups=groups, eps=eps)
    out = jax.block_until_ready(out)
    assert out.shape == (B, dim + sum(dim_outs), F_, H, W), out.shape

    ref = jax.block_until_ready(
        feature_map_consolidator_ref(x, fmaps, params, groups=groups, eps=eps))
    # Kernel intentionally uses bf16 MXU operands (f32 accumulate) per the perf
    # review; compare against the f32 HIGHEST-precision reference with a slightly
    # widened tolerance.
    np.testing.assert_allclose(np.asarray(out), np.asarray(ref), rtol=2e-2, atol=2e-2)

    print("KERNEL_OK")
</pallas_src>

<mosaic_0001>
module attributes {stable_mosaic.version = 11 : i64} {
  func.func @probe(%arg0: memref<8x256xf32, #tpu.memory_space<vmem>>, %arg1: memref<8x256xf32, #tpu.memory_space<vmem>>) attributes {dimension_semantics = [], scalar_prefetch = 0 : i64, scratch_operands = 0 : i64, tpu.core_type = #tpu.core_type<tc>} {
    %c0 = arith.constant 0 : index
    %c0_0 = arith.constant 0 : index
    %0 = vector.load %arg0[%c0, %c0_0] : memref<8x256xf32, #tpu.memory_space<vmem>>, vector<8x256xf32>
    %c5_i32 = arith.constant 5 : i32
    %1 = tpu.dynamic_rotate %0 by %c5_i32 dim 1 : vector<8x256xf32>, i32 -> vector<8x256xf32>
    %c0_1 = arith.constant 0 : index
    %c0_2 = arith.constant 0 : index
    %2 = vector.load %arg1[%c0_1, %c0_2] : memref<8x256xf32, #tpu.memory_space<vmem>>, vector<8x256xf32>
    tpu.vector_store %arg1[%c0_1, %c0_2], %1 {strides = array<i32>} : memref<8x256xf32, #tpu.memory_space<vmem>>, vector<8x256xf32>,
    return
  }
}

</mosaic_0001>

<llo_original>
// kernel: tpu_custom_call.1
$region0: #{tpu_custom_call.1}
  #allocation0 [shape = 'u32[]', space=smem, size = 0x4, offset = 0x4, fixed_abs, tag = 'smem constant byte address 0x4 - core index']
  #allocation1 [shape = 'u32[144,128]{1,0:T(1,128)}', space=vmem, size = 0x12000, scoped, tag = 'internal scratch']
  %s0 = inlined_call_operand.hbm [shape: f32[8,256], index: 0, kind: input, shape index: {}]
  %s1 = inlined_call_operand.hbm [shape: f32[8,256], index: 1, kind: output, shape index: {}]
  %s2 = sld [smem:[#allocation0]]
  $region18: #{tpu_custom_call.1} parent=0
    _
  %s4 = ssub.s32 1, %s2
  %s5 = scalar_select 0, %s4, %s2
  $region1: #{tpu_custom_call.1} parent=0
    #allocation2 [shape = 'u8[8192]{0}', space=vmem, size = 0x2000, scoped, tag = 'input window, operand 0, single buffered']
    #allocation3 [shape = 's32[1]{0}', space=sflag, size = 0x4, scoped, tag = 'scoped memory for tpu_custom_call.1']
    #allocation4 [shape = 's32[1]{0}', space=sflag, size = 0x4, scoped, tag = 'scoped memory for tpu_custom_call.1']
    #allocation5 [shape = 'u8[8192]{0}', space=vmem, size = 0x2000, scoped, tag = 'output window, operand 0, single buffered']
    %6 = vsyncpa [#allocation3], 0
    %7 = vsyncpa [#allocation4], 0
    // Predicated region
    $region2: #{tpu_custom_call.1} parent=1 // pred_check
      _
    $region3: #{tpu_custom_call.1} parent=1 // pred_check_branch
      %9 = sbr.rel (0) target = $region5
    $region4: #{tpu_custom_call.1} parent=1 // pred_region
      %s11 = ssub.s32 256, 256
      %12 = vsyncadd [#allocation3], %s11
      %s14 = sshll.u32 [#allocation2], 4
      %s15 = int_to_ptr.vmem [resolvable:$true] %s14
      %17 = dma.hbm_to_vmem [thread:$0]  %s0, 256, %s15, [#allocation3]
    $region5: #{tpu_custom_call.1} parent=1 // pred_fallthru
      _
    // Predicated region
    $region6: #{tpu_custom_call.1} parent=1 // pred_check
      _
    $region7: #{tpu_custom_call.1} parent=1 // pred_check_branch
      %19 = sbr.rel (0) target = $region9
    $region8: #{tpu_custom_call.1} parent=1 // pred_region
      %20 = dma.done [#allocation3], 256
    $region9: #{tpu_custom_call.1} parent=1 // pred_fallthru
      _
    %v21 = vld [vmem:[#allocation2] sm:$0xff]
    %v22 = vld [vmem:[#allocation2 + $0x8] sm:$0xff]
    %23 = vrot.lane.b32.xlu0 %v21, 5
    %v24 = vpop.permute.xlu0 %23
    %25 = vrot.lane.b32.xlu0 %v22, 5
    %v26 = vpop.permute.xlu0 %25
    %v27 = vlaneseq
    %v28 = vand.u32 %v27, 127
    %vm29 = vcmp.lt.s32.totalorder %v28, 5
    %v30 = vsel %vm29, %v24, %v26
    %v31 = vsel %vm29, %v26, %v24
    %32 = vst [vmem:[#allocation5] sm:$0xff] %v31
    %33 = vst [vmem:[#allocation5 + $0x8] sm:$0xff] %v30
    // Predicated region
    $region10: #{tpu_custom_call.1} parent=1 // pred_check
      _
    $region11: #{tpu_custom_call.1} parent=1 // pred_check_branch
      %35 = sbr.rel (0) target = $region13
    $region12: #{tpu_custom_call.1} parent=1 // pred_region
      %s37 = ssub.s32 256, 256
      %38 = vsyncadd [#allocation4], %s37
      %s40 = sshll.u32 [#allocation5], 4
      %s41 = int_to_ptr.vmem [resolvable:$true] %s40
      %43 = dma.vmem_to_hbm [thread:$0]  %s41, 256, %s1, [#allocation4]
    $region13: #{tpu_custom_call.1} parent=1 // pred_fallthru
      _
    // Predicated region
    $region14: #{tpu_custom_call.1} parent=1 // pred_check
      _
    $region15: #{tpu_custom_call.1} parent=1 // pred_check_branch
      %45 = sbr.rel (0) target = $region17
    $region16: #{tpu_custom_call.1} parent=1 // pred_region
      %46 = dma.done [#allocation4], 256
    $region17: #{tpu_custom_call.1} parent=1 // pred_fallthru
      _
    %47 = vsyncpa [#allocation3], 1
    %48 = vsyncpa [#allocation4], 1

</llo_original>
